<compile_context>
chip_gen: v7x
topology: tpu7x:2x2x1
jax: 0.10.0
libtpu: 0.0.40
codegen_flags: <defaults>
</compile_context>

<pallas_src>
import functools
import math

import jax
import jax.numpy as jnp
from jax.experimental import pallas as pl
from jax.experimental.pallas import tpu as pltpu


def _round_up(x: int, m: int) -> int:
    return ((x + m - 1) // m) * m


# ---------------------------------------------------------------------------
# Kernel 1: support = tanh?(features @ w_t)   (w_t already transposed: [Fin,Fout])
# ---------------------------------------------------------------------------
def _linear_kernel(f_ref, wt_ref, out_ref, *, active: bool):
    s = jnp.dot(f_ref[...], wt_ref[...], preferred_element_type=jnp.float32)
    if active:
        s = jnp.tanh(s)  # small [TM, Fout_pad] tile, rides the EUP slot
    out_ref[...] = s.astype(out_ref.dtype)


# ---------------------------------------------------------------------------
# Kernel 2: out = adj @ support, tiled, f32 accumulator, reduction axis last
# ---------------------------------------------------------------------------
def _spmm_kernel(adj_ref, sup_ref, out_ref, acc_ref):
    @pl.when(pl.program_id(2) == 0)
    def _():
        acc_ref[...] = jnp.zeros_like(acc_ref)

    acc_ref[...] += jnp.dot(adj_ref[...], sup_ref[...],
                            preferred_element_type=jnp.float32)

    @pl.when(pl.program_id(2) == pl.num_programs(2) - 1)
    def _():
        out_ref[...] = acc_ref[...].astype(out_ref.dtype)


def gnn_layer(features, w, adj, active: bool,
              *, tm: int = 512, tk: int = 512, tn: int = 256):
    n, f_in = features.shape
    f_out = w.shape[0]

    # Padded, tile-aligned sizes (lane dims padded to multiples of 128).
    f_in_p = _round_up(f_in, 128)
    f_out_p = _round_up(f_out, 128)
    n_p = _round_up(n, 128)

    tm = min(tm, n_p)
    tk = min(tk, n_p)
    tn = tn if (f_out_p % tn == 0) else 128
    n_p = _round_up(n_p, math.lcm(tm, tk))

    # bf16 inputs (halves dominant HBM traffic on adj), f32 accumulation.
    f_bf = features.astype(jnp.bfloat16)
    wt_bf = jnp.transpose(w).astype(jnp.bfloat16)   # [F_in, F_out]
    adj_bf = adj.astype(jnp.bfloat16)

    f_pad = jnp.pad(f_bf, ((0, n_p - n), (0, f_in_p - f_in)))
    wt_pad = jnp.pad(wt_bf, ((0, f_in_p - f_in), (0, f_out_p - f_out)))
    adj_pad = jnp.pad(adj_bf, ((0, n_p - n), (0, n_p - n)))

    # ---- kernel 1: support [N_pad, F_out_pad] in bf16 -----------------------
    tml = tm  # row tile; n_p is a multiple of tm by construction
    support = pl.pallas_call(
        functools.partial(_linear_kernel, active=active),
        out_shape=jax.ShapeDtypeStruct((n_p, f_out_p), jnp.bfloat16),
        grid_spec=pltpu.PrefetchScalarGridSpec(
            num_scalar_prefetch=0,
            grid=(n_p // tml,),
            in_specs=[
                pl.BlockSpec((tml, f_in_p), lambda i: (i, 0)),
                pl.BlockSpec((f_in_p, f_out_p), lambda i: (0, 0)),  # w resident
            ],
            out_specs=pl.BlockSpec((tml, f_out_p), lambda i: (i, 0)),
        ),
        compiler_params=pltpu.CompilerParams(
            dimension_semantics=("parallel",)),
        cost_estimate=pl.CostEstimate(
            flops=2 * n_p * f_in_p * f_out_p,
            transcendentals=(n_p * f_out_p) if active else 0,
            bytes_accessed=2 * (n_p * f_in_p + f_in_p * f_out_p
                                + n_p * f_out_p)),
    )(f_pad, wt_pad)

    # ---- kernel 2: out = adj @ support --------------------------------------
    grid = (n_p // tm, f_out_p // tn, n_p // tk)
    out_pad = pl.pallas_call(
        _spmm_kernel,
        out_shape=jax.ShapeDtypeStruct((n_p, f_out_p), jnp.float32),
        grid_spec=pltpu.PrefetchScalarGridSpec(
            num_scalar_prefetch=0,
            grid=grid,
            in_specs=[
                pl.BlockSpec((tm, tk), lambda i, j, k: (i, k)),   # adj tile
                pl.BlockSpec((tk, tn), lambda i, j, k: (k, j)),   # support tile
            ],
            out_specs=pl.BlockSpec((tm, tn), lambda i, j, k: (i, j)),
            scratch_shapes=[pltpu.VMEM((tm, tn), jnp.float32)],
        ),
        compiler_params=pltpu.CompilerParams(
            dimension_semantics=("parallel", "parallel", "arbitrary")),
        cost_estimate=pl.CostEstimate(
            flops=2 * n_p * n_p * f_out_p,
            transcendentals=0,
            bytes_accessed=2 * n_p * n_p + 2 * n_p * f_out_p
                           + 4 * n_p * f_out_p),
    )(adj_pad, support)

    return out_pad[:n, :f_out]


# ---------------------------------------------------------------------------
# References
# ---------------------------------------------------------------------------
def gnn_layer_ref(features, w, adj, active: bool):
    support = features @ w.T
    if active:
        support = jnp.tanh(support)
    return adj @ support


def gnn_layer_ref_bf16(features, w, adj, active: bool):
    # Same math but with the kernel's bf16 quantization points, f32 compute.
    f = features.astype(jnp.bfloat16).astype(jnp.float32)
    wt = w.T.astype(jnp.bfloat16).astype(jnp.float32)
    a = adj.astype(jnp.bfloat16).astype(jnp.float32)
    support = f @ wt
    if active:
        support = jnp.tanh(support)
    support = support.astype(jnp.bfloat16).astype(jnp.float32)
    return a @ support


if __name__ == "__main__":
    key = jax.random.PRNGKey(0)
    k1, k2, k3 = jax.random.split(key, 3)

    n_nodes = 16
    in_features = 32
    out_features = 8

    features = jax.random.normal(k1, (n_nodes, in_features), dtype=jnp.float32)
    adj = jax.random.uniform(k2, (n_nodes, n_nodes), dtype=jnp.float32)
    # deterministic xavier-uniform-style init for w [out_features, in_features]
    limit = (6.0 / (in_features + out_features)) ** 0.5
    w = jax.random.uniform(
        k3, (out_features, in_features), dtype=jnp.float32,
        minval=-limit, maxval=limit,
    )

    out_active = jax.block_until_ready(gnn_layer(features, w, adj, active=True))
    out_plain = jax.block_until_ready(gnn_layer(features, w, adj, active=False))

    assert out_active.shape == (n_nodes, out_features)
    assert out_plain.shape == (n_nodes, out_features)

    # Tight check vs. a reference using the same bf16 quantization points.
    assert jnp.allclose(out_active, gnn_layer_ref_bf16(features, w, adj, True),
                        atol=1e-2, rtol=1e-2)
    assert jnp.allclose(out_plain, gnn_layer_ref_bf16(features, w, adj, False),
                        atol=1e-2, rtol=1e-2)
    # Looser check vs. the full-f32 module semantics (bf16 input rounding).
    assert jnp.allclose(out_active, gnn_layer_ref(features, w, adj, True),
                        atol=1e-1, rtol=1e-1)
    assert jnp.allclose(out_plain, gnn_layer_ref(features, w, adj, False),
                        atol=1e-1, rtol=1e-1)

    print("KERNEL_OK")
</pallas_src>

<mosaic_0001>
module attributes {stable_mosaic.version = 11 : i64} {
  func.func @_linear_kernel(%arg0: i32, %arg1: memref<128x128xbf16, #tpu.memory_space<vmem>>, %arg2: memref<128x128xbf16, #tpu.memory_space<vmem>>, %arg3: memref<128x128xbf16, #tpu.memory_space<vmem>>) attributes {dimension_semantics = [#tpu.dimension_semantics<parallel>], iteration_bounds = array<i64: 1>, scalar_prefetch = 0 : i64, scratch_operands = 0 : i64, tpu.core_type = #tpu.core_type<tc>, window_params = [{transform_indices = @transform_0, window_bounds = array<i64: 128, 128>}, {pipeline_mode = #tpu.pipeline_mode<synchronous>, transform_indices = @transform_1, window_bounds = array<i64: 128, 128>}, {transform_indices = @transform_2, window_bounds = array<i64: 128, 128>}]} {
    %c0 = arith.constant 0 : index
    %c0_0 = arith.constant 0 : index
    %0 = vector.load %arg1[%c0, %c0_0] : memref<128x128xbf16, #tpu.memory_space<vmem>>, vector<128x128xbf16>
    %c0_1 = arith.constant 0 : index
    %c0_2 = arith.constant 0 : index
    %1 = vector.load %arg2[%c0_1, %c0_2] : memref<128x128xbf16, #tpu.memory_space<vmem>>, vector<128x128xbf16>
    %cst = arith.constant dense<0.000000e+00> : vector<128x128xf32>
    %2 = tpu.matmul %0, %1, %cst {dimension_numbers = #tpu.dot_dimension_numbers<[1], [0], [0], [1], [0, 0, 1, 1], [], []>} : vector<128x128xbf16>, vector<128x128xbf16>, vector<128x128xf32> -> vector<128x128xf32>
    %3 = math.tanh %2 : vector<128x128xf32>
    %4 = arith.truncf %3 : vector<128x128xf32> to vector<128x128xbf16>
    %c0_3 = arith.constant 0 : index
    %c0_4 = arith.constant 0 : index
    %5 = vector.load %arg3[%c0_3, %c0_4] : memref<128x128xbf16, #tpu.memory_space<vmem>>, vector<128x128xbf16>
    tpu.vector_store %arg3[%c0_3, %c0_4], %4 {strides = array<i32>} : memref<128x128xbf16, #tpu.memory_space<vmem>>, vector<128x128xbf16>,
    return
  }
  func.func @transform_0(%arg0: i32) -> (i32, i32) {
    %c0_i32 = arith.constant 0 : i32
    %c0_i32_0 = arith.constant 0 : i32
    return %arg0, %c0_i32 : i32, i32
  }
  func.func @transform_1(%arg0: i32) -> (i32, i32) {
    %c0_i32 = arith.constant 0 : i32
    %c0_i32_0 = arith.constant 0 : i32
    %c0_i32_1 = arith.constant 0 : i32
    return %c0_i32, %c0_i32_0 : i32, i32
  }
  func.func @transform_2(%arg0: i32) -> (i32, i32) {
    %c0_i32 = arith.constant 0 : i32
    %c0_i32_0 = arith.constant 0 : i32
    return %arg0, %c0_i32 : i32, i32
  }
}

</mosaic_0001>

<llo_original>
// kernel: tpu_custom_call.1
$region0: #{tpu_custom_call.1}
  #allocation0 [shape = 'u32[]', space=smem, size = 0x4, offset = 0x4, fixed_abs, tag = 'smem constant byte address 0x4 - core index']
  #allocation1 [shape = 'u32[144,128]{1,0:T(1,128)}', space=vmem, size = 0x12000, scoped, tag = 'internal scratch']
  %s0 = inlined_call_operand.hbm [shape: bf16[128,128], index: 0, kind: input, shape index: {}]
  %s1 = inlined_call_operand.hbm [shape: bf16[128,128], index: 1, kind: input, shape index: {}]
  %s2 = inlined_call_operand.hbm [shape: bf16[128,128], index: 2, kind: output, shape index: {}]
  %s3 = sld [smem:[#allocation0]]
  $region26: #{tpu_custom_call.1} parent=0
    _
  %s5 = ssub.s32 1, %s3
  %s6 = scalar_select 0, %s5, %s3
  $region1: #{tpu_custom_call.1} parent=0
    #allocation2 [shape = 'u8[32768]{0}', space=vmem, size = 0x8000, scoped, tag = 'input window, operand 0, single buffered']
    #allocation3 [shape = 's32[1]{0}', space=sflag, size = 0x4, scoped, tag = 'scoped memory for tpu_custom_call.1']
    #allocation4 [shape = 's32[1]{0}', space=sflag, size = 0x4, scoped, tag = 'scoped memory for tpu_custom_call.1']
    #allocation5 [shape = 'u8[32768]{0}', space=vmem, size = 0x8000, scoped, tag = 'input window, operand 1, single buffered']
    #allocation6 [shape = 's32[1]{0}', space=sflag, size = 0x4, scoped, tag = 'scoped memory for tpu_custom_call.1']
    #allocation7 [shape = 'u8[32768]{0}', space=vmem, size = 0x8000, scoped, tag = 'output window, operand 0, single buffered']
    %7 = vsyncpa [#allocation3], 0
    %8 = vsyncpa [#allocation6], 0
    %9 = vsyncpa [#allocation4], 0
    // Predicated region
    $region2: #{tpu_custom_call.1} parent=1 // pred_check
      _
    $region3: #{tpu_custom_call.1} parent=1 // pred_check_branch
      %11 = sbr.rel (0) target = $region5
    $region4: #{tpu_custom_call.1} parent=1 // pred_region
      %s13 = ssub.s32 1024, 1024
      %14 = vsyncadd [#allocation3], %s13
      %s15 = sshll.u32 [#allocation2], 4
      %s16 = int_to_ptr.vmem [resolvable:$true] %s15
      %21 = dma.hbm_to_vmem [thread:$0]  %s0, 1024, %s16, [#allocation3], 64, 64, 4
    $region5: #{tpu_custom_call.1} parent=1 // pred_fallthru
      _
    // Predicated region
    $region6: #{tpu_custom_call.1} parent=1 // pred_check
      _
    $region7: #{tpu_custom_call.1} parent=1 // pred_check_branch
      %23 = sbr.rel (0) target = $region9
    $region8: #{tpu_custom_call.1} parent=1 // pred_region
      %s25 = ssub.s32 1024, 1024
      %26 = vsyncadd [#allocation6], %s25
      %s27 = sshll.u32 [#allocation5], 4
      %s28 = int_to_ptr.vmem [resolvable:$true] %s27
      %33 = dma.hbm_to_vmem [thread:$0]  %s1, 1024, %s28, [#allocation6], 64, 64, 4
    $region9: #{tpu_custom_call.1} parent=1 // pred_fallthru
      _
    // Predicated region
    $region10: #{tpu_custom_call.1} parent=1 // pred_check
      _
    $region11: #{tpu_custom_call.1} parent=1 // pred_check_branch
      %35 = sbr.rel (0) target = $region13
    $region12: #{tpu_custom_call.1} parent=1 // pred_region
      %36 = dma.done [#allocation3], 1024
    $region13: #{tpu_custom_call.1} parent=1 // pred_fallthru
      _
    // Predicated region
    $region14: #{tpu_custom_call.1} parent=1 // pred_check
      _
    $region15: #{tpu_custom_call.1} parent=1 // pred_check_branch
      %38 = sbr.rel (0) target = $region17
    $region16: #{tpu_custom_call.1} parent=1 // pred_region
      %39 = dma.done [#allocation6], 1024
    $region17: #{tpu_custom_call.1} parent=1 // pred_fallthru
      _
    %v41 = vld [vmem:[#allocation2] sm:$0xf]
    %v42 = vld [vmem:[#allocation2 + $0x4] sm:$0xf]
    %v43 = vld [vmem:[#allocation2 + $0x8] sm:$0xf]
    %v44 = vld [vmem:[#allocation2 + $0xc] sm:$0xf]
    %v45 = vld [vmem:[#allocation2 + $0x10] sm:$0xf]
    %v46 = vld [vmem:[#allocation2 + $0x14] sm:$0xf]
    %v47 = vld [vmem:[#allocation2 + $0x18] sm:$0xf]
    %v48 = vld [vmem:[#allocation2 + $0x1c] sm:$0xf]
    %v49 = vld [vmem:[#allocation2 + $0x20] sm:$0xf]
    %v50 = vld [vmem:[#allocation2 + $0x24] sm:$0xf]
    %v51 = vld [vmem:[#allocation2 + $0x28] sm:$0xf]
    %v52 = vld [vmem:[#allocation2 + $0x2c] sm:$0xf]
    %v53 = vld [vmem:[#allocation2 + $0x30] sm:$0xf]
    %v54 = vld [vmem:[#allocation2 + $0x34] sm:$0xf]
    %v55 = vld [vmem:[#allocation2 + $0x38] sm:$0xf]
    %v56 = vld [vmem:[#allocation2 + $0x3c] sm:$0xf]
    %v57 = vld [vmem:[#allocation5] sm:$0xf]
    %v58 = vld [vmem:[#allocation5 + $0x4] sm:$0xf]
    %v59 = vld [vmem:[#allocation5 + $0x8] sm:$0xf]
    %v60 = vld [vmem:[#allocation5 + $0xc] sm:$0xf]
    %v61 = vld [vmem:[#allocation5 + $0x10] sm:$0xf]
    %v62 = vld [vmem:[#allocation5 + $0x14] sm:$0xf]
    %v63 = vld [vmem:[#allocation5 + $0x18] sm:$0xf]
    %v64 = vld [vmem:[#allocation5 + $0x1c] sm:$0xf]
    %v65 = vld [vmem:[#allocation5 + $0x20] sm:$0xf]
    %v66 = vld [vmem:[#allocation5 + $0x24] sm:$0xf]
    %v67 = vld [vmem:[#allocation5 + $0x28] sm:$0xf]
    %v68 = vld [vmem:[#allocation5 + $0x2c] sm:$0xf]
    %v69 = vld [vmem:[#allocation5 + $0x30] sm:$0xf]
    %v70 = vld [vmem:[#allocation5 + $0x34] sm:$0xf]
    %v71 = vld [vmem:[#allocation5 + $0x38] sm:$0xf]
    %v72 = vld [vmem:[#allocation5 + $0x3c] sm:$0xf]
    %v89 = vunpack.c.l.b16 %v41
    %v90 = vunpack.c.l.b16 %v42
    %v91 = vunpack.c.l.b16 %v43
    %v92 = vunpack.c.l.b16 %v44
    %v93 = vunpack.c.l.b16 %v45
    %v94 = vunpack.c.l.b16 %v46
    %v95 = vunpack.c.l.b16 %v47
    %v96 = vunpack.c.l.b16 %v48
    %v97 = vunpack.c.l.b16 %v49
    %v98 = vunpack.c.l.b16 %v50
    %v99 = vunpack.c.l.b16 %v51
    %v100 = vunpack.c.l.b16 %v52
    %v101 = vunpack.c.l.b16 %v53
    %v102 = vunpack.c.l.b16 %v54
    %v103 = vunpack.c.l.b16 %v55
    %v104 = vunpack.c.l.b16 %v56
    %v105 = vpack.c.b16 %v90, %v89
    %v106 = vpack.c.b16 %v92, %v91
    %v107 = vpack.c.b16 %v94, %v93
    %v108 = vpack.c.b16 %v96, %v95
    %v109 = vpack.c.b16 %v98, %v97
    %v110 = vpack.c.b16 %v100, %v99
    %v111 = vpack.c.b16 %v102, %v101
    %v112 = vpack.c.b16 %v104, %v103
    %v137 = vunpack.c.l.b16 %v57
    %v138 = vunpack.c.l.b16 %v58
    %v139 = vunpack.c.l.b16 %v59
    %v140 = vunpack.c.l.b16 %v60
    %v141 = vunpack.c.l.b16 %v61
    %v142 = vunpack.c.l.b16 %v62
    %v143 = vunpack.c.l.b16 %v63
    %v144 = vunpack.c.l.b16 %v64
    %v145 = vunpack.c.l.b16 %v65
    %v146 = vunpack.c.l.b16 %v66
    %v147 = vunpack.c.l.b16 %v67
    %v148 = vunpack.c.l.b16 %v68
    %v149 = vunpack.c.l.b16 %v69
    %v150 = vunpack.c.l.b16 %v70
    %v151 = vunpack.c.l.b16 %v71
    %v152 = vunpack.c.l.b16 %v72
    %v153 = vpack.c.b16 %v138, %v137
    %v154 = vpack.c.b16 %v140, %v139
    %v155 = vpack.c.b16 %v142, %v141
    %v156 = vpack.c.b16 %v144, %v143
    %v157 = vpack.c.b16 %v146, %v145
    %v158 = vpack.c.b16 %v148, %v147
    %v159 = vpack.c.b16 %v150, %v149
    %v160 = vpack.c.b16 %v152, %v151
    %169 = vmatprep.subr.bf16.mxu0 0
    %170 = vmatpush1.bf16.msra.mxu0 %v153
    %171 = vmatprep.subr.bf16.mxu0 0
    %172 = vmatpush1.bf16.msra.mxu0 %v154
    %173 = vmatprep.subr.bf16.mxu0 0
    %174 = vmatpush1.bf16.msra.mxu0 %v155
    %175 = vmatprep.subr.bf16.mxu0 0
    %176 = vmatpush1.bf16.msra.mxu0 %v156
    %177 = vmatprep.subr.bf16.mxu0 0
    %178 = vmatpush1.bf16.msra.mxu0 %v157
    %179 = vmatprep.subr.bf16.mxu0 0
    %180 = vmatpush1.bf16.msra.mxu0 %v158
    %181 = vmatprep.subr.bf16.mxu0 0
    %182 = vmatpush1.bf16.msra.mxu0 %v159
    %183 = vmatprep.subr.bf16.mxu0 0
    %184 = vmatpush1.bf16.msra.mxu0 %v160
    %185 = vmatprep.subr.bf16.mxu0 0
    %186 = vmatpush1.bf16.msra.mxu0 0
    %187 = vmatprep.subr.bf16.mxu0 0
    %188 = vmatpush1.bf16.msra.mxu0 0
    %189 = vmatprep.subr.bf16.mxu0 0
    %190 = vmatpush1.bf16.msra.mxu0 0
    %191 = vmatprep.subr.bf16.mxu0 0
    %192 = vmatpush1.bf16.msra.mxu0 0
    %193 = vmatprep.subr.bf16.mxu0 0
    %194 = vmatpush1.bf16.msra.mxu0 0
    %195 = vmatprep.subr.bf16.mxu0 0
    %196 = vmatpush1.bf16.msra.mxu0 0
    %197 = vmatprep.subr.bf16.mxu0 0
    %198 = vmatpush1.bf16.msra.mxu0 0
    %199 = vmatprep.subr.bf16.mxu0 0
    %200 = vmatpush1.bf16.msra.mxu0 0
    %201 = vmatprep.mubr.bf16.mxu0 0
    %202 = vmatmul.mubr.bf16.gmra.mrb[0].mxu0 %v105
    %v203 = vpop.f32.mrb[0].mxu0
    %v204 = vadd.f32 0.0, %v203
    %v205 = vpop.f32.mrb[0].mxu0
    %v206 = vpop.f32.mrb[0].mxu0
    %v207 = vadd.f32 0.0, %v206
    %v208 = vpop.f32.mrb[0].mxu0
    %209 = vmatprep.mubr.bf16.mxu0 0
    %210 = vmatmul.mubr.bf16.gmra.mrb[0].mxu0 %v106
    %v211 = vpop.f32.mrb[0].mxu0
    %v212 = vadd.f32 0.0, %v211
    %v213 = vpop.f32.mrb[0].mxu0
    %v214 = vpop.f32.mrb[0].mxu0
    %v215 = vadd.f32 0.0, %v214
    %v216 = vpop.f32.mrb[0].mxu0
    %217 = vmatprep.mubr.bf16.mxu0 0
    %218 = vmatmul.mubr.bf16.gmra.mrb[0].mxu0 %v107
    %v219 = vpop.f32.mrb[0].mxu0
    %v220 = vadd.f32 0.0, %v219
    %v221 = vpop.f32.mrb[0].mxu0
    %v222 = vpop.f32.mrb[0].mxu0
    %v223 = vadd.f32 0.0, %v222
    %v224 = vpop.f32.mrb[0].mxu0
    %225 = vmatprep.mubr.bf16.mxu0 0
    %226 = vmatmul.mubr.bf16.gmra.mrb[0].mxu0 %v108
    %v227 = vpop.f32.mrb[0].mxu0
    %v228 = vadd.f32 0.0, %v227
    %v229 = vpop.f32.mrb[0].mxu0
    %v230 = vpop.f32.mrb[0].mxu0
    %v231 = vadd.f32 0.0, %v230
    %v232 = vpop.f32.mrb[0].mxu0
    %233 = vmatprep.mubr.bf16.mxu0 0
    %234 = vmatmul.mubr.bf16.gmra.mrb[0].mxu0 %v109
    %v235 = vpop.f32.mrb[0].mxu0
    %v236 = vadd.f32 0.0, %v235
    %v237 = vpop.f32.mrb[0].mxu0
    %v238 = vpop.f32.mrb[0].mxu0
    %v239 = vadd.f32 0.0, %v238
    %v240 = vpop.f32.mrb[0].mxu0
    %241 = vmatprep.mubr.bf16.mxu0 0
    %242 = vmatmul.mubr.bf16.gmra.mrb[0].mxu0 %v110
    %v243 = vpop.f32.mrb[0].mxu0
    %v244 = vadd.f32 0.0, %v243
    %v245 = vpop.f32.mrb[0].mxu0
    %v246 = vpop.f32.mrb[0].mxu0
    %v247 = vadd.f32 0.0, %v246
    %v248 = vpop.f32.mrb[0].mxu0
    %249 = vmatprep.mubr.bf16.mxu0 0
    %250 = vmatmul.mubr.bf16.gmra.mrb[0].mxu0 %v111
    %v251 = vpop.f32.mrb[0].mxu0
    %v252 = vadd.f32 0.0, %v251
    %v253 = vpop.f32.mrb[0].mxu0
    %v254 = vpop.f32.mrb[0].mxu0
    %v255 = vadd.f32 0.0, %v254
    %v256 = vpop.f32.mrb[0].mxu0
    %257 = vmatprep.mubr.bf16.mxu0 0
    %258 = vmatmul.mubr.bf16.gmra.mrb[0].mxu0 %v112
    %v259 = vpop.f32.mrb[0].mxu0
    %v260 = vadd.f32 0.0, %v259
    %v261 = vpop.f32.mrb[0].mxu0
    %v262 = vpop.f32.mrb[0].mxu0
    %v263 = vadd.f32 0.0, %v262
    %v264 = vpop.f32.mrb[0].mxu0
    %265 = vdwg.mxu0
    %v266 = vtanh.pop %v204
    %v267 = vtanh.pop %v207
    %v268 = vtanh.pop %v212
    %v269 = vtanh.pop %v215
    %v270 = vtanh.pop %v220
    %v271 = vtanh.pop %v223
    %v272 = vtanh.pop %v228
    %v273 = vtanh.pop %v231
    %v274 = vtanh.pop %v236
    %v275 = vtanh.pop %v239
    %v276 = vtanh.pop %v244
    %v277 = vtanh.pop %v247
    %v278 = vtanh.pop %v252
    %v279 = vtanh.pop %v255
    %v280 = vtanh.pop %v260
    %v281 = vtanh.pop %v263
    %v282 = vpack.c.bf16 %v267, %v266
    %v283 = vpack.c.bf16 %v269, %v268
    %v284 = vpack.c.bf16 %v271, %v270
    %v285 = vpack.c.bf16 %v273, %v272
    %v286 = vpack.c.bf16 %v275, %v274
    %v287 = vpack.c.bf16 %v277, %v276
    %v288 = vpack.c.bf16 %v279, %v278
    %v289 = vpack.c.bf16 %v281, %v280
    %v298 = vunpack.c.l.b16 %v282
    %v299 = vunpack.c.h.b16 %v282
    %v300 = vunpack.c.l.b16 %v283
    %v301 = vunpack.c.h.b16 %v283
    %v302 = vunpack.c.l.b16 %v284
    %v303 = vunpack.c.h.b16 %v284
    %v304 = vunpack.c.l.b16 %v285
    %v305 = vunpack.c.h.b16 %v285
    %v306 = vunpack.c.l.b16 %v286
    %v307 = vunpack.c.h.b16 %v286
    %v308 = vunpack.c.l.b16 %v287
    %v309 = vunpack.c.h.b16 %v287
    %v310 = vunpack.c.l.b16 %v288
    %v311 = vunpack.c.h.b16 %v288
    %v312 = vunpack.c.l.b16 %v289
    %v313 = vunpack.c.h.b16 %v289
    %v314 = vpack.c.b16 %v298, %v298
    %v315 = vpack.c.b16 %v299, %v299
    %v316 = vpack.c.b16 %v300, %v300
    %v317 = vpack.c.b16 %v301, %v301
    %v318 = vpack.c.b16 %v302, %v302
    %v319 = vpack.c.b16 %v303, %v303
    %v320 = vpack.c.b16 %v304, %v304
    %v321 = vpack.c.b16 %v305, %v305
    %v322 = vpack.c.b16 %v306, %v306
    %v323 = vpack.c.b16 %v307, %v307
    %v324 = vpack.c.b16 %v308, %v308
    %v325 = vpack.c.b16 %v309, %v309
    %v326 = vpack.c.b16 %v310, %v310
    %v327 = vpack.c.b16 %v311, %v311
    %v328 = vpack.c.b16 %v312, %v312
    %v329 = vpack.c.b16 %v313, %v313
    %346 = vst [vmem:[#allocation7] sm:$0xf] %v314
    %347 = vst [vmem:[#allocation7 + $0x4] sm:$0xf] %v315
    %348 = vst [vmem:[#allocation7 + $0x8] sm:$0xf] %v316
    %349 = vst [vmem:[#allocation7 + $0xc] sm:$0xf] %v317
    %350 = vst [vmem:[#allocation7 + $0x10] sm:$0xf] %v318
    %351 = vst [vmem:[#allocation7 + $0x14] sm:$0xf] %v319
    %352 = vst [vmem:[#allocation7 + $0x18] sm:$0xf] %v320
    %353 = vst [vmem:[#allocation7 + $0x1c] sm:$0xf] %v321
    %354 = vst [vmem:[#allocation7 + $0x20] sm:$0xf] %v322
    %355 = vst [vmem:[#allocation7 + $0x24] sm:$0xf] %v323
    %356 = vst [vmem:[#allocation7 + $0x28] sm:$0xf] %v324
    %357 = vst [vmem:[#allocation7 + $0x2c] sm:$0xf] %v325
    %358 = vst [vmem:[#allocation7 + $0x30] sm:$0xf] %v326
    %359 = vst [vmem:[#allocation7 + $0x34] sm:$0xf] %v327
    %360 = vst [vmem:[#allocation7 + $0x38] sm:$0xf] %v328
    %361 = vst [vmem:[#allocation7 + $0x3c] sm:$0xf] %v329
    // Predicated region
    $region18: #{tpu_custom_call.1} parent=1 // pred_check
      _
    $region19: #{tpu_custom_call.1} parent=1 // pred_check_branch
      %363 = sbr.rel (0) target = $region21
    $region20: #{tpu_custom_call.1} parent=1 // pred_region
      %s365 = ssub.s32 1024, 1024
      %366 = vsyncadd [#allocation4], %s365
      %s367 = sshll.u32 [#allocation7], 4
      %s368 = int_to_ptr.vmem [resolvable:$true] %s367
      %373 = dma.vmem_to_hbm [thread:$0]  %s368, 1024, %s2, [#allocation4], 64, 64, 4
    $region21: #{tpu_custom_call.1} parent=1 // pred_fallthru
      _
    // Predicated region
    $region22: #{tpu_custom_call.1} parent=1 // pred_check
      _
    $region23: #{tpu_custom_call.1} parent=1 // pred_check_branch
      %375 = sbr.rel (0) target = $region25
    $region24: #{tpu_custom_call.1} parent=1 // pred_region
      %376 = dma.done [#allocation4], 1024
    $region25: #{tpu_custom_call.1} parent=1 // pred_fallthru
      _
    %377 = vsyncpa [#allocation3], 1
    %378 = vsyncpa [#allocation6], 1
    %379 = vsyncpa [#allocation4], 1

</llo_original>
